<compile_context>
chip_gen: v7x
topology: tpu7x:2x2x1
jax: 0.10.0
libtpu: 0.0.40
codegen_flags: <defaults>
</compile_context>

<pallas_src>
import functools

import jax
import jax.numpy as jnp
from jax.experimental import pallas as pl
from jax.experimental.pallas import tpu as pltpu

_NEG_INF = -1e30  # masked-vocab bias (avoid -inf to keep all arithmetic NaN-free)


def _round_up(x, m):
    return -(-x // m) * m


# ----------------------------------------------------------------------------
# Kernel 1: batched, time-tiled 'average' downsample.
# Input is the padded slab viewed as (B, T_out, ratio*D): each output frame is
# the mean of `ratio` contiguous D-wide lane slices (zero padding included in
# the last partial frame, exactly like torch F.pad + view + mean(dim=1)).
# ----------------------------------------------------------------------------
def _avg_downsample_kernel(x_ref, o_ref, *, ratio, dim):
    acc = x_ref[:, 0:dim].astype(jnp.float32)
    for k in range(1, ratio):
        acc = acc + x_ref[:, k * dim:(k + 1) * dim].astype(jnp.float32)
    o_ref[...] = (acc * (1.0 / ratio)).astype(o_ref.dtype)


def batched_avg_downsample(features, ratio, *, tile_t=256, out_dtype=jnp.bfloat16):
    """features: list of (T_i, D) arrays -> (B, ceil(maxT/ratio), D) padded batch."""
    b = len(features)
    d = int(features[0].shape[1])
    t_max = max(int(f.shape[0]) for f in features)
    t_pad = _round_up(t_max, ratio)
    stacked = jnp.stack(
        [jnp.pad(f, ((0, t_pad - int(f.shape[0])), (0, 0))) for f in features], axis=0
    )
    t_out = t_pad // ratio
    # Free host-side view: (B, t_pad, D) -> (B, t_out, ratio*D) so the kernel
    # only issues contiguous lane loads (no sublane-strided access).
    grouped = stacked.reshape(b, t_out, ratio * d)
    tile_t = max(8, min(_round_up(tile_t, 8), _round_up(t_out, 8)))
    grid = (b, pl.cdiv(t_out, tile_t))
    return pl.pallas_call(
        functools.partial(_avg_downsample_kernel, ratio=ratio, dim=d),
        grid=grid,
        in_specs=[pl.BlockSpec((pl.Squeezed(), tile_t, ratio * d),
                               lambda i, j: (i, j, 0))],
        out_specs=pl.BlockSpec((pl.Squeezed(), tile_t, d), lambda i, j: (i, j, 0)),
        out_shape=jax.ShapeDtypeStruct((b, t_out, d), out_dtype),
        compiler_params=pltpu.CompilerParams(
            dimension_semantics=("parallel", "parallel")),
    )(grouped)


# ----------------------------------------------------------------------------
# Kernel 2: fused encoder-linear -> asr_head -> (optional) log_softmax ->
# greedy argmax, gridded over (row tiles ["parallel"], vocab steps ["arbitrary"]).
#
#   j == 0                : hidden = x@Wenc + benc  -> VMEM scratch; init
#                           online max / sum-exp / argmax accumulators.
#   pass 1 (j <  n_vtiles): logits_j = hidden@Wasr_j + basr_j; online update of
#                           running max m, running sum-exp l, first-argmax idx.
#   j == n_vtiles - 1     : write greedy predictions (final after pass 1).
#   pass 2 (j >= n_vtiles): (only when log-probs requested and V is tiled)
#                           recompute logits_j from the resident hidden and
#                           write lp_j = logits_j - m - log(l).
#   special case          : need_lp and n_vtiles == 1 -> direct full-row
#                           log_softmax, no recompute.
# ----------------------------------------------------------------------------
def _fused_enc_asr_kernel(x_ref, wenc_ref, benc_ref, wasr_ref, basr_ref,
                          *refs, n_vtiles, need_lp, tile_v):
    if need_lp:
        lp_ref, pred_ref, hid_sc, m_sc, l_sc, idx_sc = refs
    else:
        pred_ref, hid_sc, m_sc, l_sc, idx_sc = refs

    j = pl.program_id(1)

    @pl.when(j == 0)
    def _():
        x = x_ref[...].astype(jnp.bfloat16)
        h = jnp.dot(x, wenc_ref[...], preferred_element_type=jnp.float32)
        hid_sc[...] = h + benc_ref[...]
        m_sc[...] = jnp.full_like(m_sc, -jnp.inf)
        l_sc[...] = jnp.zeros_like(l_sc)
        idx_sc[...] = jnp.zeros_like(idx_sc)

    def block_logits():
        return (jnp.dot(hid_sc[...].astype(jnp.bfloat16), wasr_ref[...],
                        preferred_element_type=jnp.float32) + basr_ref[...])

    if need_lp and n_vtiles == 1:
        # Whole (padded) vocab in one tile: direct log_softmax, no recompute.
        logits = block_logits()
        m = jnp.max(logits, axis=-1, keepdims=True)
        s = logits - m
        lse = jnp.log(jnp.sum(jnp.exp(s), axis=-1, keepdims=True))
        lp_ref[...] = (s - lse).astype(lp_ref.dtype)
        lane = jax.lax.broadcasted_iota(jnp.int32, logits.shape, 1)
        first_arg = jnp.min(jnp.where(logits == m, lane, tile_v),
                            axis=-1, keepdims=True)
        pred_ref[...] = first_arg.astype(jnp.int32)
        return

    @pl.when(j < n_vtiles)
    def _():
        logits = block_logits()
        bmax = jnp.max(logits, axis=-1, keepdims=True)
        lane = jax.lax.broadcasted_iota(jnp.int32, logits.shape, 1)
        barg = jnp.min(jnp.where(logits == bmax, lane, tile_v),
                       axis=-1, keepdims=True).astype(jnp.int32) + j * tile_v
        m_old = m_sc[...]
        m_new = jnp.maximum(m_old, bmax)
        l_sc[...] = (l_sc[...] * jnp.exp(m_old - m_new)
                     + jnp.sum(jnp.exp(logits - m_new), axis=-1, keepdims=True))
        # strict '>' keeps the FIRST maximum (torch/jnp argmax tie-break)
        idx_sc[...] = jnp.where(bmax > m_old, barg, idx_sc[...])
        m_sc[...] = m_new

    @pl.when(j == n_vtiles - 1)
    def _():
        pred_ref[...] = idx_sc[...]

    if need_lp:
        @pl.when(j >= n_vtiles)
        def _():
            logits = block_logits()
            lp_ref[...] = (logits - m_sc[...] - jnp.log(l_sc[...])
                           ).astype(lp_ref.dtype)


def fused_encoder_asr_head(x, w_enc, b_enc, w_asr, b_asr, *,
                           tile_n=256, tile_v=1024, return_log_prob=True,
                           vmem_limit_bytes=None):
    """x: (N, D) rows in (t, b) order.  Returns (log_prob (N, V) f32 | None,
    pred (N,) int32)."""
    n, d = x.shape
    e = int(w_enc.shape[1])
    v = int(w_asr.shape[1])

    # Pad E and V to lane-dense multiples of 128; V additionally to a multiple
    # of tile_v so every vocab block is full (padded columns get -1e30 bias).
    e_pad = _round_up(e, 128)
    tile_v = min(_round_up(tile_v, 128), _round_up(v, 128))
    v_pad = _round_up(v, tile_v)
    n_vtiles = v_pad // tile_v

    w_enc = jnp.asarray(w_enc, jnp.bfloat16)
    w_asr = jnp.asarray(w_asr, jnp.bfloat16)
    b_enc = jnp.asarray(b_enc, jnp.float32)
    b_asr = jnp.asarray(b_asr, jnp.float32)
    if e_pad != e:
        w_enc = jnp.pad(w_enc, ((0, 0), (0, e_pad - e)))
        b_enc = jnp.pad(b_enc, (0, e_pad - e))
        w_asr = jnp.pad(w_asr, ((0, e_pad - e), (0, 0)))
    if v_pad != v:
        w_asr = jnp.pad(w_asr, ((0, 0), (0, v_pad - v)))
        b_asr = jnp.pad(b_asr, (0, v_pad - v), constant_values=_NEG_INF)

    # tile_n: multiple of 8.  Generation note: on v7x (64 MiB VMEM) keep
    # tile_n/tile_v moderate; on v5e/v6e raise tile_v (W_asr residency) and
    # vmem_limit_bytes instead.
    tile_n = max(8, min(_round_up(tile_n, 8), _round_up(n, 8)))
    n_pad = _round_up(n, tile_n)
    if n_pad != n:
        x = jnp.pad(x, ((0, n_pad - n), (0, 0)))
    n_rtiles = n_pad // tile_n

    two_sweep = return_log_prob and n_vtiles > 1
    n_vsteps = 2 * n_vtiles if two_sweep else n_vtiles
    grid = (n_rtiles, n_vsteps)

    in_specs = [
        pl.BlockSpec((tile_n, d), lambda i, j: (i, 0)),
        pl.BlockSpec((d, e_pad), lambda i, j: (0, 0)),    # VMEM-resident
        pl.BlockSpec((1, e_pad), lambda i, j: (0, 0)),
        pl.BlockSpec((e_pad, tile_v), lambda i, j: (0, j % n_vtiles)),
        pl.BlockSpec((1, tile_v), lambda i, j: (0, j % n_vtiles)),
    ]
    scratch_shapes = [
        pltpu.VMEM((tile_n, e_pad), jnp.float32),   # hidden (computed once/row tile)
        pltpu.VMEM((tile_n, 1), jnp.float32),       # running max
        pltpu.VMEM((tile_n, 1), jnp.float32),       # running sum-exp
        pltpu.VMEM((tile_n, 1), jnp.int32),         # running argmax
    ]
    pred_spec = pl.BlockSpec((tile_n, 1), lambda i, j: (i, 0))
    pred_shape = jax.ShapeDtypeStruct((n_pad, 1), jnp.int32)
    if return_log_prob:
        # lp block is written during the second sweep; its index is held at
        # (i, 0) during the accumulation sweep (never flushed before written).
        out_specs = (
            pl.BlockSpec((tile_n, tile_v),
                         lambda i, j: (i, jnp.maximum(j - n_vtiles, 0))),
            pred_spec,
        )
        out_shape = (jax.ShapeDtypeStruct((n_pad, v_pad), jnp.float32), pred_shape)
    else:
        out_specs = (pred_spec,)
        out_shape = (pred_shape,)

    # Advisory cost estimate so XLA can overlap the host-side glue.
    asr_sweeps = 2 if two_sweep else 1
    flops = 2 * n_pad * (d * e_pad + asr_sweeps * e_pad * v_pad)
    bytes_accessed = (n_pad * d * x.dtype.itemsize
                      + d * e_pad * 2 + e_pad * 4
                      + n_rtiles * asr_sweeps * e_pad * v_pad * 2 + v_pad * 4
                      + n_pad * 4
                      + (n_pad * v_pad * 4 if return_log_prob else 0))
    cost = pl.CostEstimate(flops=int(flops),
                           transcendentals=int(n_pad * v_pad),
                           bytes_accessed=int(bytes_accessed))

    kernel = functools.partial(_fused_enc_asr_kernel, n_vtiles=n_vtiles,
                               need_lp=return_log_prob, tile_v=tile_v)
    outs = pl.pallas_call(
        kernel,
        grid=grid,
        in_specs=in_specs,
        out_specs=out_specs,
        out_shape=out_shape,
        scratch_shapes=scratch_shapes,
        compiler_params=pltpu.CompilerParams(
            dimension_semantics=("parallel", "arbitrary"),
            vmem_limit_bytes=vmem_limit_bytes),
        cost_estimate=cost,
    )(x, w_enc, b_enc.reshape(1, e_pad), w_asr, b_asr.reshape(1, v_pad))

    if return_log_prob:
        lp, pred = outs
        lp = lp[:n, :v]
    else:
        pred = outs[0]
        lp = None
    return lp, pred[:n, 0]


# ----------------------------------------------------------------------------
# DownstreamExpert (Pallas): only the tensor-level forward compute.
# ----------------------------------------------------------------------------
class DownstreamExpertPallas:
    def __init__(self, upstream_dim, encoder_embed_dim, vocab_size,
                 downsample_ratio=2, downsample_method="average",
                 tile_n=256, tile_v=1024, tile_t=256,
                 vmem_limit_bytes=None, seed=0):
        self.upstream_dim = upstream_dim
        self.encoder_embed_dim = encoder_embed_dim
        self.vocab_size = vocab_size
        self.downsample_ratio = downsample_ratio
        self.downsample_method = downsample_method
        self.tile_n = tile_n
        self.tile_v = tile_v
        self.tile_t = tile_t
        self.vmem_limit_bytes = vmem_limit_bytes
        if downsample_method == "concat":
            upstream_dim *= downsample_ratio
        self.eff_upstream_dim = upstream_dim

        key = jax.random.PRNGKey(seed)
        k1, k2, k3 = jax.random.split(key, 3)
        # encoder stand-in projection (TODO(synk): real fairseq S2T encoder)
        self.enc_w = (jax.random.normal(
            k1, (self.eff_upstream_dim, encoder_embed_dim), jnp.float32
        ) / jnp.sqrt(self.eff_upstream_dim)).astype(jnp.bfloat16)
        self.enc_b = jnp.zeros((encoder_embed_dim,), jnp.float32)
        # asr_head = nn.Linear(encoder_embed_dim, len(asr_dict))
        self.asr_w = (jax.random.normal(
            k2, (encoder_embed_dim, vocab_size), jnp.float32
        ) / jnp.sqrt(encoder_embed_dim)).astype(jnp.bfloat16)
        self.asr_b = 0.01 * jax.random.normal(k3, (vocab_size,), jnp.float32)

    # --- DownstreamExpert.downsample (non-batched / glue paths) --------------
    def downsample(self, features):
        r = self.downsample_ratio
        if r == 1:
            return features
        new_features = []
        for feat in features:
            if self.downsample_method == "drop":
                new_features.append(feat[::r])
            elif self.downsample_method == "concat":
                t, d = feat.shape
                rem = t % r
                if rem != 0:
                    feat = jnp.pad(feat, ((0, r - rem), (0, 0)))
                new_features.append(feat.reshape(feat.shape[0] // r, d * r))
            elif self.downsample_method == "average":
                # per-utterance fallback; the batched Pallas path is in forward()
                t, d = feat.shape
                rem = t % r
                if rem != 0:
                    feat = jnp.pad(feat, ((0, r - rem), (0, 0)))
                new_features.append(feat.reshape(-1, r, d).mean(axis=1))
            else:
                raise NotImplementedError
        return new_features

    # --- pad_sequence(batch_first=True, padding_value=0.0) ------------------
    @staticmethod
    def pad_sequence(features):
        max_len = max(int(f.shape[0]) for f in features)
        padded = [jnp.pad(f, ((0, max_len - f.shape[0]), (0, 0))) for f in features]
        return jnp.stack(padded, axis=0)  # (B, T, D)

    # --- forward (tensor paths) ---------------------------------------------
    def forward(self, features, *, return_log_prob=True, tile_v=None):
        r = self.downsample_ratio

        if r == 1 or self.downsample_method in ("drop", "concat"):
            feats = self.downsample(features)
            features_length = jnp.asarray([int(f.shape[0]) for f in feats], jnp.int32)
            src_tokens = self.pad_sequence(feats)              # (B, T, D)
        elif self.downsample_method == "average":
            # single batched Pallas call: downsample + pad in one shot (bf16 out)
            features_length = jnp.asarray(
                [-(-int(f.shape[0]) // r) for f in features], jnp.int32)
            src_tokens = batched_avg_downsample(features, r, tile_t=self.tile_t)
        else:
            raise NotImplementedError

        b, t, d = src_tokens.shape

        # Transpose the small D-wide input to (T, B, D) so rows are processed
        # in (t, b) order: the (T, B, V) fairseq log-prob layout then falls out
        # of the kernel with NO post-kernel transpose of the V-wide output.
        flat_in = jnp.transpose(src_tokens, (1, 0, 2)).reshape(t * b, d)
        lp_flat, pred_flat = fused_encoder_asr_head(
            flat_in, self.enc_w, self.enc_b, self.asr_w, self.asr_b,
            tile_n=self.tile_n,
            tile_v=self.tile_v if tile_v is None else tile_v,
            return_log_prob=return_log_prob,
            vmem_limit_bytes=self.vmem_limit_bytes)

        log_prob = (None if lp_flat is None
                    else lp_flat.reshape(t, b, self.vocab_size))   # (T, B, V)
        predict = pred_flat.reshape(t, b).transpose(1, 0)          # (B, T)

        # TODO(synk): CTC loss / label-smoothed CE / beam-search generation
        # (dynamic programming + fairseq components, no clean Pallas equivalent).
        return log_prob, predict, features_length


if __name__ == "__main__":
    key = jax.random.PRNGKey(0)
    k1, k2 = jax.random.split(key)

    upstream_dim = 64
    encoder_embed_dim = 128
    vocab_size = 200   # pads internally to 256 -> exercises the vocab masking
    # variable-length unpadded upstream features, as the module receives them
    feat1 = jax.random.normal(k1, (48, upstream_dim), jnp.float32)
    feat2 = jax.random.normal(k2, (36, upstream_dim), jnp.float32)
    features = [feat1, feat2]

    expert = DownstreamExpertPallas(
        upstream_dim=upstream_dim,
        encoder_embed_dim=encoder_embed_dim,
        vocab_size=vocab_size,
        downsample_ratio=2,
        downsample_method="average",
        tile_n=16,    # small tiles so the demo runs multi-step pipelined grids
        tile_v=128,   # 2 vocab tiles -> exercises online accumulators + 2-sweep
        tile_t=8,     # time-tiled downsample
    )

    # training/CTC path: exact log-probs + greedy predictions (V-tiled)
    log_prob, predict, lengths = expert.forward(features)
    # inference path: argmax only, no (N, V) log-prob writeback
    _, predict_fast, _ = expert.forward(features, return_log_prob=False)
    # single-vocab-tile path (W_asr resident, direct softmax, no recompute)
    log_prob_1t, predict_1t, _ = expert.forward(features, tile_v=512)
    jax.block_until_ready((log_prob, predict, lengths, predict_fast,
                           log_prob_1t, predict_1t))

    t_out, b = 24, 2
    assert log_prob.shape == (t_out, b, vocab_size)
    assert predict.shape == (b, t_out)
    assert [int(v) for v in lengths] == [24, 18]
    # valid log_softmax rows (padded vocab columns contribute ~0 probability)
    row_sums = jnp.exp(log_prob).sum(axis=-1)
    assert bool(jnp.all(jnp.abs(row_sums - 1.0) < 1e-3))
    # fused in-kernel argmax matches argmax over the returned log-probs
    ref_pred = jnp.argmax(log_prob, axis=-1).transpose(1, 0)
    assert bool(jnp.all(predict == ref_pred))
    # inference-only path and single-tile path agree with the tiled path
    assert bool(jnp.all(predict_fast == predict))
    assert bool(jnp.all(predict_1t == predict))
    assert bool(jnp.max(jnp.abs(log_prob_1t - log_prob)) < 1e-3)

    print("KERNEL_OK")
</pallas_src>

<mosaic_0001>
module attributes {stable_mosaic.version = 11 : i64} {
  func.func @_avg_downsample_kernel(%arg0: i32, %arg1: i32, %arg2: memref<1x8x128xf32, #tpu.memory_space<vmem>>, %arg3: memref<1x8x64xbf16, #tpu.memory_space<vmem>>) attributes {dimension_semantics = [#tpu.dimension_semantics<parallel>, #tpu.dimension_semantics<parallel>], iteration_bounds = array<i64: 2, 3>, scalar_prefetch = 0 : i64, scratch_operands = 0 : i64, tpu.core_type = #tpu.core_type<tc>, window_params = [{transform_indices = @transform_0, window_bounds = array<i64: 1, 8, 128>}, {transform_indices = @transform_1, window_bounds = array<i64: 1, 8, 64>}]} {
    %c0 = arith.constant 0 : index
    %c0_0 = arith.constant 0 : index
    %c0_1 = arith.constant 0 : index
    %0 = vector.load %arg2[%c0, %c0_0, %c0_1] : memref<1x8x128xf32, #tpu.memory_space<vmem>>, vector<1x8x64xf32>
    %1 = vector.shape_cast %0 : vector<1x8x64xf32> to vector<8x64xf32>
    %c0_2 = arith.constant 0 : index
    %c0_3 = arith.constant 0 : index
    %c64 = arith.constant 64 : index
    %2 = vector.load %arg2[%c0_2, %c0_3, %c64] : memref<1x8x128xf32, #tpu.memory_space<vmem>>, vector<1x8x64xf32>
    %3 = vector.shape_cast %2 : vector<1x8x64xf32> to vector<8x64xf32>
    %4 = arith.addf %1, %3 : vector<8x64xf32>
    %cst = arith.constant 5.000000e-01 : f32
    %5 = vector.broadcast %cst : f32 to vector<8x64xf32>
    %6 = arith.mulf %4, %5 : vector<8x64xf32>
    %7 = arith.truncf %6 : vector<8x64xf32> to vector<8x64xbf16>
    %c0_4 = arith.constant 0 : index
    %c0_5 = arith.constant 0 : index
    %c0_6 = arith.constant 0 : index
    %8 = vector.load %arg3[%c0_4, %c0_5, %c0_6] : memref<1x8x64xbf16, #tpu.memory_space<vmem>>, vector<1x8x64xbf16>
    %9 = vector.shape_cast %8 : vector<1x8x64xbf16> to vector<8x64xbf16>
    %10 = vector.shape_cast %7 : vector<8x64xbf16> to vector<1x8x64xbf16>
    tpu.vector_store %arg3[%c0_4, %c0_5, %c0_6], %10 {strides = array<i32>} : memref<1x8x64xbf16, #tpu.memory_space<vmem>>, vector<1x8x64xbf16>,
    return
  }
  func.func @transform_0(%arg0: i32, %arg1: i32) -> (i32, i32, i32) {
    %c0_i32 = arith.constant 0 : i32
    %c0_i32_0 = arith.constant 0 : i32
    return %arg0, %arg1, %c0_i32 : i32, i32, i32
  }
  func.func @transform_1(%arg0: i32, %arg1: i32) -> (i32, i32, i32) {
    %c0_i32 = arith.constant 0 : i32
    %c0_i32_0 = arith.constant 0 : i32
    return %arg0, %arg1, %c0_i32 : i32, i32, i32
  }
}

</mosaic_0001>

<llo_original>
// kernel: tpu_custom_call.1
$region0: #{tpu_custom_call.1}
  #allocation0 [shape = 'u32[]', space=smem, size = 0x4, offset = 0x4, fixed_abs, tag = 'smem constant byte address 0x4 - core index']
  #allocation1 [shape = 'u32[144,128]{1,0:T(1,128)}', space=vmem, size = 0x12000, scoped, tag = 'internal scratch']
  %s0 = inlined_call_operand.hbm [shape: f32[2,24,128], index: 0, kind: input, shape index: {}]
  %s1 = inlined_call_operand.hbm [shape: bf16[2,24,64], index: 1, kind: output, shape index: {}]
  %s2 = sld [smem:[#allocation0]]
  $region41: #{tpu_custom_call.1} parent=0
    _
  %s4 = ssub.s32 1, %s2
  %s5 = scalar_select 0, %s4, %s2
  $region1: #{tpu_custom_call.1} parent=0
    #allocation2 [shape = 'u8[8192]{0}', space=vmem, size = 0x2000, scoped, tag = 'input window, operand 0']
    #allocation3 [shape = 's32[2]{0}', space=sflag, size = 0x8, scoped, tag = 'scoped memory for tpu_custom_call.1']
    #allocation4 [shape = 's32[2]{0}', space=sflag, size = 0x8, scoped, tag = 'scoped memory for tpu_custom_call.1']
    #allocation5 [shape = 'u8[4096]{0}', space=vmem, size = 0x1000, scoped, tag = 'output window, operand 0']
    %6 = vsyncpa [#allocation3], 0
    %s7 = scalar_lea.sflag [#allocation3], 1
    %8 = vsyncpa %s7, 0
    %9 = vsyncpa [#allocation4], 0
    %s10 = scalar_lea.sflag [#allocation4], 1
    %11 = vsyncpa %s10, 0
    loop: start=0, step=1, limit=8
    $region2: #{tpu_custom_call.1} parent=1 // loop_pre_header
      _
    $region3: #{tpu_custom_call.1} parent=1 // loop_header
      %s13 = sphi 0, %s17
      %p14 = scmp.ge.s32.totalorder %s13, 8
      %s20 = sphi 0, %s32
      %s21 = sphi 0, %s28
      %s22 = sphi 0, %s20
      %s23 = sphi 0, %s21
      %s24 = sphi 0, %s22
      %s25 = sphi 0, %s23
      %s37 = sphi 0, %s39
      %s40 = sphi 0, %s37
      %s41 = sphi 0, %s40
      %s57 = sphi 0, %s41
      %s65 = sphi 0, %s67
      %s68 = sphi 0, %s65
      %s69 = sphi 0, %s68
      %s85 = sphi 0, %s69
    $region4: #{tpu_custom_call.1} parent=1 // loop_header_branch
      %16 = sbr.rel (%p14) target = $region8
    $region5: #{tpu_custom_call.1} parent=1 // loop_body
      %s18 = ssub.s32 %s13, 1
      %s19 = ssub.s32 %s13, 2
      %s26 = sadd.s32 1, %s21
      %p27 = scmp.ge.s32.totalorder %s26, 3
      %s28 = scalar_select %p27, 0, %s26
      %s29 = sadd.s32 1, %s20
      %s30 = scalar_select %p27, %s29, %s20
      %p31 = scmp.ge.s32.totalorder %s30, 2
      %s32 = scalar_select %p31, 0, %s30
      %s33 = ssub.s32 %s20, %s32
      %s34 = ssub.s32 %s21, %s28
      %s35 = sor.u32 %s33, %s34
      %p36 = scmp.eq.s32.totalorder %s35, 0
      %s38 = sadd.s32 %s37, 1
      %s39 = scalar_select %p36, %s37, %s38
      %p42 = pneg %p36
      %p43 = scmp.eq.s32.totalorder %s13, 5
      %p44 = por %p42, %p43
      %p45 = scmp.ne.s32.totalorder %s37, %s40
      %p46 = scmp.eq.s32.totalorder %s13, 0
      %p47 = por %p45, %p46
      %p48 = scmp.ne.s32.totalorder %s37, %s40
      %p49 = scmp.eq.s32.totalorder %s18, 5
      %p50 = por %p48, %p49
      %p51 = scmp.ne.s32.totalorder %s40, %s41
      %p52 = scmp.eq.s32.totalorder %s18, 0
      %p53 = por %p51, %p52
      %p54 = scmp.ne.s32.totalorder %s40, %s41
      %p55 = scmp.eq.s32.totalorder %s19, 5
      %p56 = por %p54, %p55
      %p58 = scmp.ne.s32.totalorder %s41, %s57
      %p59 = scmp.eq.s32.totalorder %s19, 0
      %p60 = por %p58, %p59
      %s61 = ssub.s32 %s20, %s32
      %s62 = ssub.s32 %s21, %s28
      %s63 = sor.u32 %s61, %s62
      %p64 = scmp.eq.s32.totalorder %s63, 0
      %s66 = sadd.s32 %s65, 1
      %s67 = scalar_select %p64, %s65, %s66
      %p70 = pneg %p64
      %p71 = scmp.eq.s32.totalorder %s13, 5
      %p72 = por %p70, %p71
      %p73 = scmp.ne.s32.totalorder %s65, %s68
      %p74 = scmp.eq.s32.totalorder %s13, 0
      %p75 = por %p73, %p74
      %p76 = scmp.ne.s32.totalorder %s65, %s68
      %p77 = scmp.eq.s32.totalorder %s18, 5
      %p78 = por %p76, %p77
      %p79 = scmp.ne.s32.totalorder %s68, %s69
      %p80 = scmp.eq.s32.totalorder %s18, 0
      %p81 = por %p79, %p80
      %p82 = scmp.ne.s32.totalorder %s68, %s69
      %p83 = scmp.eq.s32.totalorder %s19, 5
      %p84 = por %p82, %p83
      %p86 = scmp.ne.s32.totalorder %s69, %s85
      %p87 = scmp.eq.s32.totalorder %s19, 0
      %p88 = por %p86, %p87
      %p89 = scmp.le.s32.totalorder 1, %s13
      %p90 = scmp.lt.s32.totalorder %s13, 7
      %p91 = pnand %p89, %p90
      %p92 = pneg %p91
      // Predicated region
      $region9: #{tpu_custom_call.1} parent=5 // pred_check
        _
      $region10: #{tpu_custom_call.1} parent=5 // pred_check_branch
        %94 = sbr.rel (%p91) target = $region12
      $region11: #{tpu_custom_call.1} parent=5 // pred_region
        %s95 = ssub.s32 %s13, 1
      $region12: #{tpu_custom_call.1} parent=5 // pred_fallthru
        _
      %p96 = scmp.lt.s32.totalorder %s13, 6
      // Predicated region
      $region13: #{tpu_custom_call.1} parent=5 // pred_check
        %p97 = pneg %p96
      $region14: #{tpu_custom_call.1} parent=5 // pred_check_branch
        %99 = sbr.rel (%p97) target = $region16
      $region15: #{tpu_custom_call.1} parent=5 // pred_region
        // Predicated region
        $region17: #{tpu_custom_call.1} parent=15 // pred_check
          %p100 = pneg %p47
        $region18: #{tpu_custom_call.1} parent=15 // pred_check_branch
          %102 = sbr.rel (%p100) target = $region20
        $region19: #{tpu_custom_call.1} parent=15 // pred_region
          %s103 = sand.u32 %s37, 1
          %s104 = scalar_lea.sflag [#allocation3], %s103
          %s105 = sand.u32 %s37, 1
          %s106 = smul.addr %s105, 8
          %s107 = scalar_lea.vmem [#allocation2], %s106
          %s109 = ssub.s32 128, 128
          %110 = vsyncadd %s104, %s109
          %s111 = smul.addr %s20, 3
          %s112 = sadd.s32 %s21, %s111
          %s113 = smul.addr %s112, 128
          %s114 = scalar_lea.hbm %s0, %s113
          %s116 = sshll.u32 %s107, 4
          %s117 = int_to_ptr.vmem [resolvable:$true] %s116
          %119 = dma.hbm_to_vmem [thread:$0]  %s114, 128, %s117, %s104
        $region20: #{tpu_custom_call.1} parent=15 // pred_fallthru
          _
      $region16: #{tpu_custom_call.1} parent=5 // pred_fallthru
        _
      %p120 = scmp.le.s32.totalorder 1, %s13
      %p121 = scmp.lt.s32.totalorder %s13, 7
      %p122 = pnand %p120, %p121
      %p123 = pneg %p122
      // Predicated region
      $region21: #{tpu_custom_call.1} parent=5 // pred_check
        _
      $region22: #{tpu_custom_call.1} parent=5 // pred_check_branch
        %125 = sbr.rel (%p122) target = $region24
      $region23: #{tpu_custom_call.1} parent=5 // pred_region
        %s126 = ssub.s32 %s13, 1
        %s127 = sand.u32 %s40, 1
        %s128 = scalar_lea.sflag [#allocation3], %s127
        %s129 = sand.u32 %s40, 1
        %s130 = smul.addr %s129, 8
        %s131 = scalar_lea.vmem [#allocation2], %s130
        // Predicated region
        $region25: #{tpu_custom_call.1} parent=23 // pred_check
          %p132 = pneg %p53
        $region26: #{tpu_custom_call.1} parent=23 // pred_check_branch
          %134 = sbr.rel (%p132) target = $region28
        $region27: #{tpu_custom_call.1} parent=23 // pred_region
          %135 = dma.done %s128, 128
        $region28: #{tpu_custom_call.1} parent=23 // pred_fallthru
          _
        %s136 = sand.u32 %s40, 1
        %s137 = scalar_lea.sflag [#allocation3], %s136
        %s138 = sand.u32 %s40, 1
        %s139 = smul.addr %s138, 8
        %s140 = scalar_lea.vmem [#allocation2], %s139
        %p141 = pneg %p53
        %p142 = pneg %p50
        %p143 = pneg %p81
        %p144 = pneg %p78
        %s145 = sand.u32 %s68, 1
        %s146 = scalar_lea.sflag [#allocation4], %s145
        %s147 = sand.u32 %s68, 1
        %s148 = smul.addr %s147, 4
        %s149 = scalar_lea.vmem [#allocation5], %s148
        %v150 = vld [vmem:[%s131] sm:$0xff]
        %152 = vrot.lane.b32.xlu0 %v150, 64
        %v153 = vpop.permute.xlu0 %152
        %v155 = vadd.f32 %v150, %v153
        %v156 = vmul.f32 %v155, 0.5
        %v157 = vpack.c.bf16 %v156, %v156
        %vm158 = vcmask 519168
        %159 = vst.msk [vmem:[%s149] sm:$0xf] %vm158, %v157
        %s160 = sand.u32 %s68, 1
        %s161 = scalar_lea.sflag [#allocation4], %s160
        %s162 = sand.u32 %s68, 1
        %s163 = smul.addr %s162, 4
        %s164 = scalar_lea.vmem [#allocation5], %s163
        // Predicated region
        $region29: #{tpu_custom_call.1} parent=23 // pred_check
          %p165 = pneg %p78
        $region30: #{tpu_custom_call.1} parent=23 // pred_check_branch
          %167 = sbr.rel (%p165) target = $region32
        $region31: #{tpu_custom_call.1} parent=23 // pred_region
          %s169 = ssub.s32 64, 64
          %170 = vsyncadd %s161, %s169
          %s171 = smul.addr %s22, 3
          %s172 = sadd.s32 %s23, %s171
          %s173 = smul.addr %s172, 64
          %s174 = scalar_lea.hbm %s1, %s173
          %s176 = sshll.u32 %s164, 4
          %s177 = int_to_ptr.vmem [resolvable:$true] %s176
          %179 = dma.vmem_to_hbm [thread:$0]  %s177, 64, %s174, %s161
        $region32: #{tpu_custom_call.1} parent=23 // pred_fallthru
          _
      $region24: #{tpu_custom_call.1} parent=5 // pred_fallthru
        _
      %p180 = scmp.le.s32.totalorder 2, %s13
      // Predicated region
      $region33: #{tpu_custom_call.1} parent=5 // pred_check
        %p181 = pneg %p180
      $region34: #{tpu_custom_call.1} parent=5 // pred_check_branch
        %183 = sbr.rel (%p181) target = $region36
      $region35: #{tpu_custom_call.1} parent=5 // pred_region
        %s184 = ssub.s32 %s13, 2
        // Predicated region
        $region37: #{tpu_custom_call.1} parent=35 // pred_check
          %p185 = pneg %p84
        $region38: #{tpu_custom_call.1} parent=35 // pred_check_branch
          %187 = sbr.rel (%p185) target = $region40
        $region39: #{tpu_custom_call.1} parent=35 // pred_region
          %s188 = sand.u32 %s69, 1
          %s189 = scalar_lea.sflag [#allocation4], %s188
          %s190 = sand.u32 %s69, 1
          %s191 = smul.addr %s190, 4
          %s192 = scalar_lea.vmem [#allocation5], %s191
          %193 = dma.done %s189, 64
        $region40: #{tpu_custom_call.1} parent=35 // pred_fallthru
          _
      $region36: #{tpu_custom_call.1} parent=5 // pred_fallthru
        _
    $region6: #{tpu_custom_call.1} parent=1 // loop_footer
      %s17 = sadd.s32 1, %s13
    $region7: #{tpu_custom_call.1} parent=1 // loop_footer_branch
      %12 = sbr.rel target = $region3
    $region8: #{tpu_custom_call.1} parent=1 // loop_exit
      _
    %194 = vsyncpa [#allocation3], 1
    %s195 = scalar_lea.sflag [#allocation3], 1
    %196 = vsyncpa %s195, 1
    %197 = vsyncpa [#allocation4], 1
    %s198 = scalar_lea.sflag [#allocation4], 1
    %199 = vsyncpa %s198, 1

</llo_original>
